<compile_context>
chip_gen: v7x
topology: tpu7x:2x2x1
jax: 0.10.0
libtpu: 0.0.40
codegen_flags: <defaults>
</compile_context>

<pallas_src>
import functools
import math

import jax
import jax.numpy as jnp
from jax import lax
from jax.experimental import pallas as pl
from jax.experimental.pallas import tpu as pltpu


def _gcl_ang_loss_kernel(cos_ref, noise_ref, nscale_ref, tgt_ref, out_ref, *,
                         m_margin, s, batch, tile_b, use_poly, needs_mask):
    i = pl.program_id(0)

    cosine = cos_ref[...].astype(jnp.float32)        # (TB, C)  upcast in-kernel
    noise_raw = noise_ref[...].astype(jnp.float32)   # (TB, C)  ~N(0,1/3) clipped
    nscale = nscale_ref[...]                         # (1, C)   pi/2*eps/max(m)*m_list
    tgt = tgt_ref[...]                               # (TB, 1)  int32

    TB, C = cosine.shape

    # index.scatter_(1, target.view(-1,1), 1)  -> one-hot mask via iota compare
    col = lax.broadcasted_iota(jnp.int32, (TB, C), 1)
    index = col == tgt                               # bool (TB, C)

    # noise = pi/2 * eps / max(m_list) * m_list * noise   (scale precomputed)
    abs_noise = jnp.abs(nscale * noise_raw)
    # m = where(index, |noise| + m, |noise|)
    m_cur = jnp.where(index, abs_noise + m_margin, abs_noise)

    if use_poly:
        # m_cur is bounded by m + pi/2*eps (checked statically in the wrapper),
        # so cos/sin evaluate as cheap VPU polynomials (Taylor, |x| <~ 1.55 rad,
        # err < 1e-6), keeping the single EUP slot for sqrt + exp below.
        x2 = m_cur * m_cur
        cos_m = 1.0 + x2 * (-0.5 + x2 * (1.0 / 24.0 + x2 * (
            -1.0 / 720.0 + x2 * (1.0 / 40320.0 + x2 * (-1.0 / 3628800.0)))))
        sin_m = m_cur * (1.0 + x2 * (-1.0 / 6.0 + x2 * (1.0 / 120.0 + x2 * (
            -1.0 / 5040.0 + x2 * (1.0 / 362880.0)))))
    else:
        cos_m = jnp.cos(m_cur)
        sin_m = jnp.sin(m_cur)

    th = -cos_m                                      # cos(pi - m)
    mm = sin_m                                       # sin(pi - m)  (matches spec)

    sine = jnp.sqrt(jnp.clip(1.0 - cosine * cosine, 0.0, 1.0))
    phi = cosine * cos_m - sine * sin_m

    # easy_margin=False default path.
    # TODO(synk): easy_margin=True, train_cls (focal_loss) and class-weight
    #             branches are not implemented (module defaults are used).
    output = jnp.where(cosine > th, phi, cosine - mm)
    logits = s * output                              # (TB, C)

    # F.cross_entropy(s * output, target), weight=None; sum here, mean in wrapper.
    row_max = jnp.max(logits, axis=-1, keepdims=True)
    lse = row_max + jnp.log(jnp.sum(jnp.exp(logits - row_max), axis=-1,
                                    keepdims=True))
    tgt_logit = jnp.sum(jnp.where(index, logits, 0.0), axis=-1, keepdims=True)
    per_sample = lse - tgt_logit                     # (TB, 1)

    if needs_mask:
        # Mask rows past the true batch size (padded tail tile only).
        row = i * tile_b + lax.broadcasted_iota(jnp.int32, (TB, 1), 0)
        per_sample = jnp.where(row < batch, per_sample, 0.0)
    tile_sum = jnp.sum(per_sample)

    # Lane-dense (1, 8, 128) partial-sum block; each grid step owns its own
    # block -> batch axis can be "parallel" (v7x megacore), store is unmasked.
    out_ref[...] = jnp.full(out_ref.shape, tile_sum, dtype=jnp.float32)


def gcl_ang_loss(cosine, target, noise, m_list, *, m=0.5, epsilon=0.1, s=30.0,
                 tile_b=None):
    """cosine: (B, C), noise: (B, C) (pre-clipped N(0,1/3)), target: (B,) int,
    m_list: (C,) or (1, C) f32.  Returns scalar f32 loss (mean cross-entropy)."""
    B, C = cosine.shape
    tgt2d = target.reshape(B, 1).astype(jnp.int32)

    # Static parameter hoist: per-class noise scale (legit — not per-step data).
    m_list = jnp.asarray(m_list, jnp.float32).reshape(1, C)
    max_m = jnp.maximum(jnp.max(m_list), jnp.float32(1e-12))  # guard all-zero m_list
    nscale = ((math.pi / 2.0) * float(epsilon) / max_m * m_list).astype(jnp.float32)

    # Batch tile size: keep the in-kernel f32 working set (~a dozen live (TB,C)
    # f32 temporaries) around <=16 MiB so it fits scoped VMEM on every
    # generation (v5e 16 MiB default ... v7x 64 MiB physical).
    if tile_b is None:
        max_tile_elems = 256 * 1024                       # ~1 MiB f32 per temporary
        tb = max(8, min(((max_tile_elems // max(C, 1)) // 8) * 8, 1024))
    else:
        tb = max(8, (int(tile_b) // 8) * 8)
    b_pad8 = ((B + 7) // 8) * 8
    tb = min(tb, b_pad8)
    num_tiles = (B + tb - 1) // tb
    Bp = num_tiles * tb

    # Pad the batch (zeros) if B is not a multiple of the tile; padded rows are
    # masked out inside the kernel (only then is the mask emitted).
    needs_mask = Bp != B
    if needs_mask:
        cosine = jnp.pad(cosine, ((0, Bp - B), (0, 0)))
        noise = jnp.pad(noise, ((0, Bp - B), (0, 0)))
        tgt2d = jnp.pad(tgt2d, ((0, Bp - B), (0, 0)))

    in_itemsize = max(jnp.dtype(cosine.dtype).itemsize,
                      jnp.dtype(noise.dtype).itemsize)
    # 2 streams x 2 pipeline buffers of inputs + ~12 f32 temporaries per tile.
    vmem_est = tb * C * (2 * 2 * in_itemsize + 12 * 4) + (1 << 20)
    vmem_limit = int(min(max(2 * vmem_est, 32 << 20), 48 << 20))

    # Only use the VPU polynomial when the margin bound is statically small.
    use_poly = (abs(float(m)) + (math.pi / 2.0) * abs(float(epsilon))) <= 1.55

    kernel = functools.partial(
        _gcl_ang_loss_kernel,
        m_margin=float(m), s=float(s), batch=int(B), tile_b=int(tb),
        use_poly=bool(use_poly), needs_mask=bool(needs_mask),
    )

    partials = pl.pallas_call(
        kernel,
        out_shape=jax.ShapeDtypeStruct((num_tiles, 8, 128), jnp.float32),
        grid=(num_tiles,),
        in_specs=[
            pl.BlockSpec((tb, C), lambda i: (i, 0)),   # cosine (native dtype)
            pl.BlockSpec((tb, C), lambda i: (i, 0)),   # noise  (native dtype)
            pl.BlockSpec((1, C), lambda i: (0, 0)),    # per-class noise scale
            pl.BlockSpec((tb, 1), lambda i: (i, 0)),   # target
        ],
        out_specs=pl.BlockSpec((1, 8, 128), lambda i: (i, 0, 0)),
        compiler_params=pltpu.CompilerParams(
            dimension_semantics=("parallel",),
            vmem_limit_bytes=vmem_limit,
        ),
    )(cosine, noise, nscale, tgt2d)

    # Tiny final reduce (num_tiles values) + mean.
    return jnp.sum(partials[:, 0, 0]) / jnp.float32(B)


def _gcl_ang_loss_ref(cosine, target, noise, m_list, *, m=0.5, epsilon=0.1,
                      s=30.0):
    """Pure-JAX reference mirroring the PyTorch forward (easy_margin=False,
    train_cls=False, weight=None)."""
    B, C = cosine.shape
    cosine = cosine.astype(jnp.float32)
    m_list = jnp.asarray(m_list, jnp.float32).reshape(1, C)
    index = jax.nn.one_hot(target, C, dtype=bool)
    nz = math.pi / 2.0 * epsilon / jnp.max(m_list) * m_list * noise
    m_cur = jnp.where(index, jnp.abs(nz) + m, jnp.abs(nz))
    cos_m, sin_m = jnp.cos(m_cur), jnp.sin(m_cur)
    th, mm = jnp.cos(math.pi - m_cur), jnp.sin(math.pi - m_cur)
    sine = jnp.sqrt(jnp.clip(1.0 - cosine ** 2, 0.0, 1.0))
    phi = cosine * cos_m - sine * sin_m
    output = jnp.where(cosine > th, phi, cosine - mm)
    logits = s * output
    logp = jax.nn.log_softmax(logits, axis=-1)
    return -jnp.mean(jnp.sum(jnp.where(index, logp, 0.0), axis=-1))


if __name__ == "__main__":
    B, C = 8, 16  # batch, num classes

    key = jax.random.PRNGKey(0)
    k_cls, k_cos, k_tgt, k_noise = jax.random.split(key, 4)

    # Deterministic "cls_num_list" -> m_list = log(cls).max() - log(cls).
    cls_num_list = jax.random.randint(k_cls, (C,), 10, 500).astype(jnp.float32)
    log_cls = jnp.log(cls_num_list)
    m_list = (jnp.max(log_cls) - log_cls).reshape(1, C).astype(jnp.float32)

    # Inputs: cosine similarities in [-1, 1] and integer class targets.
    cosine = jax.random.uniform(k_cos, (B, C), jnp.float32, -1.0, 1.0)
    target = jax.random.randint(k_tgt, (B,), 0, C).astype(jnp.int32)

    # Normal(0, 1/3) sample, clamped to [-1, 1] (matches simpler.sample().clamp).
    noise = jnp.clip(jax.random.normal(k_noise, (B, C), jnp.float32) * (1.0 / 3.0),
                     -1.0, 1.0)

    loss = gcl_ang_loss(cosine, target, noise, m_list, m=0.5, epsilon=0.1, s=30.0)
    jax.block_until_ready(loss)

    ref = _gcl_ang_loss_ref(cosine, target, noise, m_list, m=0.5, epsilon=0.1,
                            s=30.0)
    assert loss.shape == () and jnp.isfinite(loss)
    assert jnp.allclose(loss, ref, rtol=1e-4, atol=1e-4), (loss, ref)
    print("KERNEL_OK")
</pallas_src>

<mosaic_0001>
module attributes {stable_mosaic.version = 11 : i64} {
  func.func @_gcl_ang_loss_kernel(%arg0: i32, %arg1: memref<8x16xf32, #tpu.memory_space<vmem>>, %arg2: memref<8x16xf32, #tpu.memory_space<vmem>>, %arg3: memref<1x16xf32, #tpu.memory_space<vmem>>, %arg4: memref<8x1xi32, #tpu.memory_space<vmem>>, %arg5: memref<1x8x128xf32, #tpu.memory_space<vmem>>) attributes {dimension_semantics = [#tpu.dimension_semantics<parallel>], iteration_bounds = array<i64: 1>, scalar_prefetch = 0 : i64, scratch_operands = 0 : i64, tpu.core_type = #tpu.core_type<tc>, window_params = [{transform_indices = @transform_0, window_bounds = array<i64: 8, 16>}, {transform_indices = @transform_1, window_bounds = array<i64: 8, 16>}, {pipeline_mode = #tpu.pipeline_mode<synchronous>, transform_indices = @transform_2, window_bounds = array<i64: 1, 16>}, {transform_indices = @transform_3, window_bounds = array<i64: 8, 1>}, {transform_indices = @transform_4, window_bounds = array<i64: 1, 8, 128>}]} {
    %c0 = arith.constant 0 : index
    %c0_0 = arith.constant 0 : index
    %0 = vector.load %arg1[%c0, %c0_0] : memref<8x16xf32, #tpu.memory_space<vmem>>, vector<8x16xf32>
    %c0_1 = arith.constant 0 : index
    %c0_2 = arith.constant 0 : index
    %1 = vector.load %arg2[%c0_1, %c0_2] : memref<8x16xf32, #tpu.memory_space<vmem>>, vector<8x16xf32>
    %c0_3 = arith.constant 0 : index
    %c0_4 = arith.constant 0 : index
    %2 = vector.load %arg3[%c0_3, %c0_4] : memref<1x16xf32, #tpu.memory_space<vmem>>, vector<1x16xf32>
    %c0_5 = arith.constant 0 : index
    %c0_6 = arith.constant 0 : index
    %3 = vector.load %arg4[%c0_5, %c0_6] : memref<8x1xi32, #tpu.memory_space<vmem>>, vector<8x1xi32>
    %4 = tpu.iota {dimensions = array<i32: 1>} : vector<8x16xi32>
    %5 = vector.broadcast %3 : vector<8x1xi32> to vector<8x16xi32>
    %6 = arith.cmpi eq, %4, %5 : vector<8x16xi32>
    %7 = vector.broadcast %2 : vector<1x16xf32> to vector<8x16xf32>
    %8 = arith.mulf %7, %1 : vector<8x16xf32>
    %9 = math.absf %8 : vector<8x16xf32>
    %cst = arith.constant 5.000000e-01 : f32
    %10 = vector.broadcast %cst : f32 to vector<8x16xf32>
    %11 = arith.addf %9, %10 : vector<8x16xf32>
    %12 = arith.select %6, %11, %9 : vector<8x16xi1>, vector<8x16xf32>
    %13 = arith.mulf %12, %12 : vector<8x16xf32>
    %cst_7 = arith.constant -2.755732E-7 : f32
    %14 = vector.broadcast %cst_7 : f32 to vector<8x16xf32>
    %15 = arith.mulf %13, %14 : vector<8x16xf32>
    %cst_8 = arith.constant 2.48015876E-5 : f32
    %16 = vector.broadcast %cst_8 : f32 to vector<8x16xf32>
    %17 = arith.addf %16, %15 : vector<8x16xf32>
    %18 = arith.mulf %13, %17 : vector<8x16xf32>
    %cst_9 = arith.constant -0.00138888892 : f32
    %19 = vector.broadcast %cst_9 : f32 to vector<8x16xf32>
    %20 = arith.addf %19, %18 : vector<8x16xf32>
    %21 = arith.mulf %13, %20 : vector<8x16xf32>
    %cst_10 = arith.constant 0.0416666679 : f32
    %22 = vector.broadcast %cst_10 : f32 to vector<8x16xf32>
    %23 = arith.addf %22, %21 : vector<8x16xf32>
    %24 = arith.mulf %13, %23 : vector<8x16xf32>
    %cst_11 = arith.constant -5.000000e-01 : f32
    %25 = vector.broadcast %cst_11 : f32 to vector<8x16xf32>
    %26 = arith.addf %25, %24 : vector<8x16xf32>
    %27 = arith.mulf %13, %26 : vector<8x16xf32>
    %cst_12 = arith.constant 1.000000e+00 : f32
    %28 = vector.broadcast %cst_12 : f32 to vector<8x16xf32>
    %29 = arith.addf %28, %27 : vector<8x16xf32>
    %cst_13 = arith.constant 2.75573188E-6 : f32
    %30 = vector.broadcast %cst_13 : f32 to vector<8x16xf32>
    %31 = arith.mulf %13, %30 : vector<8x16xf32>
    %cst_14 = arith.constant -1.98412701E-4 : f32
    %32 = vector.broadcast %cst_14 : f32 to vector<8x16xf32>
    %33 = arith.addf %32, %31 : vector<8x16xf32>
    %34 = arith.mulf %13, %33 : vector<8x16xf32>
    %cst_15 = arith.constant 0.00833333377 : f32
    %35 = vector.broadcast %cst_15 : f32 to vector<8x16xf32>
    %36 = arith.addf %35, %34 : vector<8x16xf32>
    %37 = arith.mulf %13, %36 : vector<8x16xf32>
    %cst_16 = arith.constant -0.166666672 : f32
    %38 = vector.broadcast %cst_16 : f32 to vector<8x16xf32>
    %39 = arith.addf %38, %37 : vector<8x16xf32>
    %40 = arith.mulf %13, %39 : vector<8x16xf32>
    %cst_17 = arith.constant 1.000000e+00 : f32
    %41 = vector.broadcast %cst_17 : f32 to vector<8x16xf32>
    %42 = arith.addf %41, %40 : vector<8x16xf32>
    %43 = arith.mulf %12, %42 : vector<8x16xf32>
    %cst_18 = arith.constant 0.000000e+00 : f32
    %44 = vector.broadcast %cst_18 : f32 to vector<8x16xf32>
    %45 = arith.subf %44, %29 : vector<8x16xf32>
    %46 = arith.mulf %0, %0 : vector<8x16xf32>
    %cst_19 = arith.constant 1.000000e+00 : f32
    %47 = vector.broadcast %cst_19 : f32 to vector<8x16xf32>
    %48 = arith.subf %47, %46 : vector<8x16xf32>
    %cst_20 = arith.constant 0.000000e+00 : f32
    %cst_21 = arith.constant 1.000000e+00 : f32
    %49 = vector.broadcast %cst_20 : f32 to vector<8x16xf32>
    %50 = arith.maximumf %49, %48 : vector<8x16xf32>
    %51 = vector.broadcast %cst_21 : f32 to vector<8x16xf32>
    %52 = arith.minimumf %51, %50 : vector<8x16xf32>
    %53 = math.sqrt %52 : vector<8x16xf32>
    %54 = arith.mulf %0, %29 : vector<8x16xf32>
    %55 = arith.mulf %53, %43 : vector<8x16xf32>
    %56 = arith.subf %54, %55 : vector<8x16xf32>
    %57 = arith.cmpf ogt, %0, %45 : vector<8x16xf32>
    %58 = arith.subf %0, %43 : vector<8x16xf32>
    %59 = arith.select %57, %56, %58 : vector<8x16xi1>, vector<8x16xf32>
    %cst_22 = arith.constant 3.000000e+01 : f32
    %60 = vector.broadcast %cst_22 : f32 to vector<8x16xf32>
    %61 = arith.mulf %60, %59 : vector<8x16xf32>
    %cst_23 = arith.constant dense<0xFF800000> : vector<8xf32>
    %62 = vector.multi_reduction <maximumf>, %61, %cst_23 [1] : vector<8x16xf32> to vector<8xf32>
    %63 = vector.shape_cast %62 : vector<8xf32> to vector<8x1xf32>
    %64 = vector.broadcast %63 : vector<8x1xf32> to vector<8x16xf32>
    %65 = arith.subf %61, %64 : vector<8x16xf32>
    %66 = math.exp %65 : vector<8x16xf32>
    %cst_24 = arith.constant dense<0.000000e+00> : vector<8xf32>
    %67 = vector.multi_reduction <add>, %66, %cst_24 [1] : vector<8x16xf32> to vector<8xf32>
    %68 = vector.shape_cast %67 : vector<8xf32> to vector<8x1xf32>
    %69 = math.log %68 : vector<8x1xf32>
    %70 = arith.addf %63, %69 : vector<8x1xf32>
    %cst_25 = arith.constant 0.000000e+00 : f32
    %71 = vector.broadcast %cst_25 : f32 to vector<8x16xf32>
    %72 = arith.select %6, %61, %71 : vector<8x16xi1>, vector<8x16xf32>
    %cst_26 = arith.constant dense<0.000000e+00> : vector<8xf32>
    %73 = vector.multi_reduction <add>, %72, %cst_26 [1] : vector<8x16xf32> to vector<8xf32>
    %74 = vector.shape_cast %73 : vector<8xf32> to vector<8x1xf32>
    %75 = arith.subf %70, %74 : vector<8x1xf32>
    %76 = vector.shape_cast %75 : vector<8x1xf32> to vector<1x8x1xf32>
    %cst_27 = arith.constant dense<0.000000e+00> : vector<1xf32>
    %77 = vector.multi_reduction <add>, %76, %cst_27 [1, 2] : vector<1x8x1xf32> to vector<1xf32>
    %78 = vector.shape_cast %77 : vector<1xf32> to vector<1x1x1xf32>
    %79 = vector.extract %78[0, 0, 0] : f32 from vector<1x1x1xf32>
    %80 = vector.broadcast %79 : f32 to vector<1x8x128xf32>
    %c0_28 = arith.constant 0 : index
    %c0_29 = arith.constant 0 : index
    %c0_30 = arith.constant 0 : index
    %81 = vector.load %arg5[%c0_28, %c0_29, %c0_30] : memref<1x8x128xf32, #tpu.memory_space<vmem>>, vector<1x8x128xf32>
    tpu.vector_store %arg5[%c0_28, %c0_29, %c0_30], %80 {strides = array<i32>} : memref<1x8x128xf32, #tpu.memory_space<vmem>>, vector<1x8x128xf32>,
    return
  }
  func.func @transform_0(%arg0: i32) -> (i32, i32) {
    %c0_i32 = arith.constant 0 : i32
    %c0_i32_0 = arith.constant 0 : i32
    return %arg0, %c0_i32 : i32, i32
  }
  func.func @transform_1(%arg0: i32) -> (i32, i32) {
    %c0_i32 = arith.constant 0 : i32
    %c0_i32_0 = arith.constant 0 : i32
    return %arg0, %c0_i32 : i32, i32
  }
  func.func @transform_2(%arg0: i32) -> (i32, i32) {
    %c0_i32 = arith.constant 0 : i32
    %c0_i32_0 = arith.constant 0 : i32
    %c0_i32_1 = arith.constant 0 : i32
    return %c0_i32, %c0_i32_0 : i32, i32
  }
  func.func @transform_3(%arg0: i32) -> (i32, i32) {
    %c0_i32 = arith.constant 0 : i32
    %c0_i32_0 = arith.constant 0 : i32
    return %arg0, %c0_i32 : i32, i32
  }
  func.func @transform_4(%arg0: i32) -> (i32, i32, i32) {
    %c0_i32 = arith.constant 0 : i32
    %c0_i32_0 = arith.constant 0 : i32
    %c0_i32_1 = arith.constant 0 : i32
    return %arg0, %c0_i32, %c0_i32_0 : i32, i32, i32
  }
}

</mosaic_0001>

<llo_original>
// kernel: tpu_custom_call.1
$region0: #{tpu_custom_call.1}
  #allocation0 [shape = 'u32[]', space=smem, size = 0x4, offset = 0x4, fixed_abs, tag = 'smem constant byte address 0x4 - core index']
  #allocation1 [shape = 'u32[144,128]{1,0:T(1,128)}', space=vmem, size = 0x12000, scoped, tag = 'internal scratch']
  %s0 = inlined_call_operand.vmem [shape: f32[8,16], index: 0, kind: input, shape index: {}]
  %s1 = inlined_call_operand.hbm [shape: f32[8,16], index: 1, kind: input, shape index: {}]
  %s2 = inlined_call_operand.vmem [shape: f32[1,16], index: 2, kind: input, shape index: {}]
  %s3 = inlined_call_operand.vmem [shape: s32[8,1], index: 3, kind: input, shape index: {}]
  %s4 = inlined_call_operand.hbm [shape: f32[1,8,128], index: 4, kind: output, shape index: {}]
  %s5 = sld [smem:[#allocation0]]
  $region30: #{tpu_custom_call.1} parent=0
    _
  %s7 = ssub.s32 1, %s5
  %s8 = scalar_select 0, %s7, %s5
  $region1: #{tpu_custom_call.1} parent=0
    #allocation2 [shape = 'u8[4096]{0}', space=vmem, size = 0x1000, scoped, tag = 'input window, operand 1, single buffered']
    #allocation3 [shape = 's32[1]{0}', space=sflag, size = 0x4, scoped, tag = 'scoped memory for tpu_custom_call.1']
    #allocation4 [shape = 's32[1]{0}', space=sflag, size = 0x4, scoped, tag = 'scoped memory for tpu_custom_call.1']
    #allocation5 [shape = 'u8[4096]{0}', space=vmem, size = 0x1000, scoped, tag = 'output window, operand 0, single buffered']
    %9 = vsyncpa [#allocation3], 0
    %10 = vsyncpa [#allocation4], 0
    // Predicated region
    $region2: #{tpu_custom_call.1} parent=1 // pred_check
      _
    $region3: #{tpu_custom_call.1} parent=1 // pred_check_branch
      %12 = sbr.rel (0) target = $region5
    $region4: #{tpu_custom_call.1} parent=1 // pred_region
      _
    $region5: #{tpu_custom_call.1} parent=1 // pred_fallthru
      _
    // Predicated region
    $region6: #{tpu_custom_call.1} parent=1 // pred_check
      _
    $region7: #{tpu_custom_call.1} parent=1 // pred_check_branch
      %14 = sbr.rel (0) target = $region9
    $region8: #{tpu_custom_call.1} parent=1 // pred_region
      %s16 = ssub.s32 128, 128
      %17 = vsyncadd [#allocation3], %s16
      %s19 = sshll.u32 [#allocation2], 4
      %s20 = int_to_ptr.vmem [resolvable:$true] %s19
      %22 = dma.hbm_to_vmem [thread:$0]  %s1, 128, %s20, [#allocation3]
    $region9: #{tpu_custom_call.1} parent=1 // pred_fallthru
      _
    // Predicated region
    $region10: #{tpu_custom_call.1} parent=1 // pred_check
      _
    $region11: #{tpu_custom_call.1} parent=1 // pred_check_branch
      %24 = sbr.rel (0) target = $region13
    $region12: #{tpu_custom_call.1} parent=1 // pred_region
      _
    $region13: #{tpu_custom_call.1} parent=1 // pred_fallthru
      _
    // Predicated region
    $region14: #{tpu_custom_call.1} parent=1 // pred_check
      _
    $region15: #{tpu_custom_call.1} parent=1 // pred_check_branch
      %26 = sbr.rel (0) target = $region17
    $region16: #{tpu_custom_call.1} parent=1 // pred_region
      _
    $region17: #{tpu_custom_call.1} parent=1 // pred_fallthru
      _
    // Predicated region
    $region18: #{tpu_custom_call.1} parent=1 // pred_check
      _
    $region19: #{tpu_custom_call.1} parent=1 // pred_check_branch
      %28 = sbr.rel (0) target = $region21
    $region20: #{tpu_custom_call.1} parent=1 // pred_region
      %29 = dma.done [#allocation3], 128
    $region21: #{tpu_custom_call.1} parent=1 // pred_fallthru
      _
    %v30 = vld [vmem:[%s0] sm:$0xff]
    %v31 = vld [vmem:[#allocation2] sm:$0xff]
    %v32 = vld [vmem:[%s2] sm:$0x1]
    %v33 = vld [vmem:[%s3] sm:$0xff]
    %v34 = vlaneseq
    %v35 = vand.u32 %v34, 127
    %36 = vset.pattern.permute.xlu0 0
    %37 = vperm.xlu0 %36, %v33
    %v38 = vpop.permute.xlu0 %37
    %vm39 = vcmp.eq.s32.totalorder %v35, %v38
    %v41 = vlaneseq
    %v42 = vshrl.u32 %v41, 7
    %v43 = vsub.s32 0, %v42
    %v44 = vrot.slane %v32, %v43
    %v46 = vmul.f32 %v44, %v31
    %v47 = vand.u32 2147483647, %v46
    %v48 = vadd.f32 %v47, 0.5
    %v49 = vsel %vm39, %v48, %v47
    %v50 = vmul.f32 %v49, %v49
    %v51 = vmul.f32 %v50, -2.755732e-07
    %v52 = vadd.f32 %v51, 2.4801588e-05
    %v53 = vmul.f32 %v50, %v52
    %v54 = vadd.f32 %v53, -0.0013888889
    %v55 = vmul.f32 %v50, %v54
    %v56 = vadd.f32 %v55, 0.041666668
    %v57 = vmul.f32 %v50, %v56
    %v58 = vadd.f32 %v57, -0.5
    %v59 = vmul.f32 %v50, %v58
    %v60 = vadd.f32 %v59, 1.0
    %v61 = vmul.f32 %v50, 2.7557319e-06
    %v62 = vadd.f32 %v61, -0.0001984127
    %v63 = vmul.f32 %v50, %v62
    %v64 = vadd.f32 %v63, 0.008333334
    %v65 = vmul.f32 %v50, %v64
    %v66 = vadd.f32 %v65, -0.16666667
    %v67 = vmul.f32 %v50, %v66
    %v68 = vadd.f32 %v67, 1.0
    %v69 = vmul.f32 %v49, %v68
    %v70 = vsub.f32 0.0, %v60
    %v71 = vmul.f32 %v30, %v30
    %v72 = vsub.f32 1.0, %v71
    %v73 = vmax.f32 %v72, 0.0
    %v74 = vmin.f32 %v73, 1.0
    %v75 = vrsqrt.pop %v74
    %v76 = vmul.f32 %v74, %v75
    %vm77 = vcmp.eq.f32.partialorder %v74, inf
    %v78 = vsel %vm77, %v74, %v76
    %vm79 = vcmp.eq.f32.partialorder %v74, 0.0
    %v80 = vand.u32 %v74, 2147483648
    %v81 = vsel %vm79, %v80, %v78
    %v82 = vmul.f32 %v30, %v60
    %v83 = vmul.f32 %v81, %v69
    %v84 = vsub.f32 %v82, %v83
    %vm85 = vcmp.gt.f32.partialorder %v30, %v70
    %v86 = vsub.f32 %v30, %v69
    %v87 = vsel %vm85, %v84, %v86
    %v88 = vmul.f32 %v87, 30.0
    %vm89 = vcmask 130048
    %v90 = vsel %vm89, %v88, -inf
    %91 = vmax.xlane.f32.xlu0 %v90
    %v92 = vpop.xlane.xlu0 %91
    %v93 = vsub.f32 %v88, %v92
    %v94 = vmul.f32 %v93, 1.442695
    %v95 = vpow.pop %v94
    %v96 = vsel %vm89, %v95, 0.0
    %97 = vadd.xlane.f32.xlu0 %v96
    %v98 = vpop.xlane.xlu0 %97
    %v99 = vlog2.pop %v98
    %v100 = vmul.f32 %v99, 0.6931472
    %v101 = vadd.f32 %v92, %v100
    %v102 = vsel %vm39, %v88, 0.0
    %v103 = vsel %vm89, %v102, 0.0
    %104 = vadd.xlane.f32.xlu0 %v103
    %v105 = vpop.xlane.xlu0 %104
    %v106 = vsub.f32 %v101, %v105
    %vm107 = vcmask 7168
    %v108 = vsel %vm107, %v106, 0.0
    %109 = vadd.xlane.f32.xlu0 %v108
    %v110 = vpop.xlane.xlu0 %109
    %v111 = vrot.slane %v110, 4
    %v112 = vadd.f32 %v110, %v111
    %v113 = vrot.slane %v112, 2
    %v114 = vadd.f32 %v112, %v113
    %v115 = vrot.slane %v114, 1
    %v116 = vadd.f32 %v114, %v115
    %s117 = vtos %v116
    %v118 = vstv %s117
    %119 = vst [vmem:[#allocation5] sm:$0xff] %v118
    // Predicated region
    $region22: #{tpu_custom_call.1} parent=1 // pred_check
      _
    $region23: #{tpu_custom_call.1} parent=1 // pred_check_branch
      %121 = sbr.rel (0) target = $region25
    $region24: #{tpu_custom_call.1} parent=1 // pred_region
      %s123 = ssub.s32 128, 128
      %124 = vsyncadd [#allocation4], %s123
      %s126 = sshll.u32 [#allocation5], 4
      %s127 = int_to_ptr.vmem [resolvable:$true] %s126
      %129 = dma.vmem_to_hbm [thread:$0]  %s127, 128, %s4, [#allocation4]
    $region25: #{tpu_custom_call.1} parent=1 // pred_fallthru
      _
    // Predicated region
    $region26: #{tpu_custom_call.1} parent=1 // pred_check
      _
    $region27: #{tpu_custom_call.1} parent=1 // pred_check_branch
      %131 = sbr.rel (0) target = $region29
    $region28: #{tpu_custom_call.1} parent=1 // pred_region
      %132 = dma.done [#allocation4], 128
    $region29: #{tpu_custom_call.1} parent=1 // pred_fallthru
      _
    %133 = vsyncpa [#allocation3], 1
    %134 = vsyncpa [#allocation4], 1

</llo_original>
